<compile_context>
chip_gen: v6e
topology: v6e:2x2x1
jax: 0.10.0
libtpu: 0.0.40
codegen_flags: <defaults>
</compile_context>

<pallas_src>
import jax
import jax.numpy as jnp
from jax.experimental import pallas as pl
from jax.experimental.pallas import tpu as pltpu


def _copy_generator_kernel(src_ref, attn_ref, gen_ref, stats_ref, out_ref,
                           onehot_sc):
    """Grid = (batch, vocab-tile, step-tile); single pass, no carried state.

    Per tile:
      copy_tile = attn @ one_hot(src)                       (MXU, bf16 -> f32)
      out       = exp(gen  - m_gen) * (prob / l_gen)
                + exp(copy - m_cpy) * ((1 - prob) / l_cpy)
    with all normalizers / the copy gate precomputed in `stats`.
    """
    v = pl.program_id(1)          # vocab-tile index
    t = pl.program_id(2)          # step-tile index
    vt = out_ref.shape[-1]

    # one_hot depends only on (batch, vocab-tile); step-tile is the innermost
    # grid axis, so rebuild when it wraps to 0 and reuse for t > 0.
    @pl.when(t == 0)
    def _build_one_hot():
        src = src_ref[0]                                          # [seq, 1] i32
        lane = jax.lax.broadcasted_iota(jnp.int32, (src.shape[0], vt), 1)
        # bf16 is exact for 0/1; MXU operand.
        onehot_sc[...] = (lane == (src - v * vt)).astype(jnp.bfloat16)

    # copy_logits tile == attn_mean @ one_hot(src); duplicate src indices
    # accumulate exactly like torch's scatter_add (f32 accumulation).
    copy_tile = jnp.dot(attn_ref[0], onehot_sc[...],
                        preferred_element_type=jnp.float32)       # [ts, vt]

    s = stats_ref[0]                                              # [ts, 4] f32
    m_gen, sc_gen = s[:, 0:1], s[:, 1:2]    # gen max,  prob / l_gen
    m_cpy, sc_cpy = s[:, 2:3], s[:, 3:4]    # copy max, (1 - prob) / l_cpy

    gen_tile = gen_ref[0]                                         # [ts, vt] f32
    out_ref[0] = (jnp.exp(gen_tile - m_gen) * sc_gen
                  + jnp.exp(copy_tile - m_cpy) * sc_cpy)


def copy_generator(src, decode_output, decode_attn, memory, gen_logits, w, b,
                   *, v_tile=None, t_tile=None,
                   vmem_limit_bytes=48 * 1024 * 1024):
    """Pointer-generator mixing.  w: [2*d_model, 1] (torch weight.T), b: [1]."""
    B, H, steps, seq = decode_attn.shape
    d = memory.shape[-1]
    V = gen_logits.shape[-1]
    f32 = jnp.float32

    # ------------------------- tile choices -------------------------------
    if v_tile is None:
        v_tile = next((c for c in (2048, 1024, 512, 256, 128) if V % c == 0), V)
    if v_tile != V and (V % v_tile or v_tile % 128):
        raise ValueError("v_tile must divide vocab and be a multiple of 128, "
                         "or equal the full vocab")
    if t_tile is None:
        t_tile = steps if steps <= 128 else next(
            (c for c in (128, 64, 32, 16, 8) if steps % c == 0), steps)
    if t_tile != steps and (steps % t_tile or t_tile % 8):
        raise ValueError("t_tile must divide steps and be a multiple of 8, "
                         "or equal steps")
    n_vt = V // v_tile
    n_tt = steps // t_tile

    # --------------- cheap XLA prologue (O(seq) / O(1) per row) -----------
    attn_mean = jnp.mean(decode_attn.astype(f32), axis=1)         # [B,steps,seq]
    attn_bf = attn_mean.astype(jnp.bfloat16)                      # kernel operand
    attn_q = attn_bf.astype(f32)                                  # what the MXU sees

    # copy gate: prob = sigmoid([attn @ memory, decode_output] @ w + b)
    context = jnp.einsum('bts,bsd->btd', attn_mean, memory.astype(f32))
    cat = jnp.concatenate([context, decode_output.astype(f32)], axis=-1)
    prob = jax.nn.sigmoid(cat @ w.astype(f32) + b.astype(f32))    # [B,steps,1]

    # generation softmax normalizer (one XLA read of gen_logits).
    gen_f32 = gen_logits.astype(f32)
    m_gen = jnp.max(gen_f32, axis=-1, keepdims=True)              # [B,steps,1]
    l_gen = jnp.sum(jnp.exp(gen_f32 - m_gen), axis=-1, keepdims=True)

    # copy softmax normalizer from the seq domain: copy_logits has at most
    # |unique(src)| non-zeros; G[b,t,k] = accumulated value of token src[b,k],
    # the remaining (V - n_unique) vocab entries are exactly 0.
    srci = src.astype(jnp.int32)
    match = (srci[:, :, None] == srci[:, None, :])                # [B,seq,seq]
    G = jnp.einsum('bts,bsk->btk', attn_q, match.astype(f32),
                   precision=jax.lax.Precision.HIGHEST)           # [B,steps,seq]
    is_first = (jnp.argmax(match, axis=-1) ==
                jnp.arange(seq)[None, :])                         # [B,seq]
    n_unique = jnp.sum(is_first, axis=-1).astype(f32)[:, None, None]
    zero_cnt = jnp.float32(V) - n_unique                          # [B,1,1]
    m_cpy = jnp.max(G, axis=-1, keepdims=True)
    m_cpy = jnp.where(zero_cnt > 0.5, jnp.maximum(m_cpy, 0.0), m_cpy)
    l_cpy = (jnp.sum(jnp.where(is_first[:, None, :],
                               jnp.exp(G - m_cpy), 0.0),
                     axis=-1, keepdims=True)
             + zero_cnt * jnp.exp(-m_cpy))                        # [B,steps,1]

    stats = jnp.concatenate(
        [m_gen, prob / l_gen, m_cpy, (1.0 - prob) / l_cpy], axis=-1)  # [B,steps,4]

    src3 = srci[:, :, None]                                       # [B,seq,1]

    # ------------------------------ kernel ---------------------------------
    grid = (B, n_vt, n_tt)
    grid_spec = pltpu.PrefetchScalarGridSpec(
        num_scalar_prefetch=0,
        grid=grid,
        in_specs=[
            pl.BlockSpec((1, seq, 1), lambda b_, v, t: (b_, 0, 0)),         # src
            pl.BlockSpec((1, t_tile, seq), lambda b_, v, t: (b_, t, 0)),    # attn bf16
            pl.BlockSpec((1, t_tile, v_tile), lambda b_, v, t: (b_, t, v)), # gen_logits
            pl.BlockSpec((1, t_tile, 4), lambda b_, v, t: (b_, t, 0)),      # stats
        ],
        out_specs=pl.BlockSpec((1, t_tile, v_tile),
                               lambda b_, v, t: (b_, t, v)),
        scratch_shapes=[pltpu.VMEM((seq, v_tile), jnp.bfloat16)],           # one_hot
    )

    return pl.pallas_call(
        _copy_generator_kernel,
        out_shape=jax.ShapeDtypeStruct((B, steps, V), f32),
        grid_spec=grid_spec,
        compiler_params=pltpu.CompilerParams(
            # batch AND vocab tiles are independent -> both TCs get work on
            # v7x even when B (and steps) are small; step-tile stays ordered
            # so the one_hot scratch cache is rebuilt exactly at t == 0.
            dimension_semantics=("parallel", "parallel", "arbitrary"),
            vmem_limit_bytes=vmem_limit_bytes),
    )(src3, attn_bf, gen_f32, stats)


def copy_generator_ref(src, decode_output, decode_attn, memory, gen_logits, w, b):
    """Pure-JAX f32 reference mirroring the PyTorch forward."""
    attn = jnp.mean(decode_attn, axis=1)                                  # [B,steps,seq]
    context = jnp.einsum('bts,bsd->btd', attn, memory)
    V = gen_logits.shape[-1]
    one_hot = jax.nn.one_hot(src, V, dtype=attn.dtype)                    # [B,seq,V]
    copy_logits = jnp.einsum('bts,bsv->btv', attn, one_hot)               # == scatter_add
    cat = jnp.concatenate([context, decode_output], axis=-1)
    prob = jax.nn.sigmoid(cat @ w + b)                                    # [B,steps,1]
    return (prob * jax.nn.softmax(gen_logits, -1)
            + (1.0 - prob) * jax.nn.softmax(copy_logits, -1))


if __name__ == "__main__":
    B, H, steps, seq, d_model, vocab = 2, 4, 16, 16, 32, 512

    key = jax.random.PRNGKey(0)
    k_src, k_dec, k_attn, k_mem, k_gen, k_w, k_b = jax.random.split(key, 7)

    src = jax.random.randint(k_src, (B, seq), 0, vocab, dtype=jnp.int32)
    src = src.at[:, 0].set(src[:, 1])     # force duplicates: exercise scatter-add accumulation
    decode_output = jax.random.normal(k_dec, (B, steps, d_model), jnp.float32)
    decode_attn = jax.nn.softmax(
        jax.random.normal(k_attn, (B, H, steps, seq), jnp.float32), axis=-1)
    memory = jax.random.normal(k_mem, (B, seq, d_model), jnp.float32)
    gen_logits = jax.random.normal(k_gen, (B, steps, vocab), jnp.float32)

    # prob_proj = nn.Linear(2*d_model, 1): weight [1, 2d] stored transposed [2d, 1]
    w = (jax.random.normal(k_w, (2 * d_model, 1), jnp.float32)
         * (1.0 / jnp.sqrt(2.0 * d_model)))
    b = jax.random.normal(k_b, (1,), jnp.float32) * 0.1

    # v_tile=256 -> 2 vocab tiles; t_tile=8 -> 2 step tiles (exercises the
    # cached one_hot reuse across step tiles and the parallel vocab axis).
    out = copy_generator(src, decode_output, decode_attn, memory, gen_logits,
                         w, b, v_tile=256, t_tile=8)
    out = jax.block_until_ready(out)

    ref = copy_generator_ref(src, decode_output, decode_attn, memory,
                             gen_logits, w, b)
    assert out.shape == (B, steps, vocab)
    # bf16 MXU operands for the copy matmul => relaxed tolerance vs f32 ref.
    assert jnp.allclose(out, ref, atol=2e-2, rtol=2e-2), "mismatch vs reference"

    print("KERNEL_OK")
</pallas_src>

<mosaic_0001>
module attributes {stable_mosaic.version = 11 : i64} {
  func.func @_copy_generator_kernel(%arg0: i32, %arg1: i32, %arg2: i32, %arg3: memref<1x16x1xi32, #tpu.memory_space<vmem>>, %arg4: memref<1x8x16xbf16, #tpu.memory_space<vmem>>, %arg5: memref<1x8x256xf32, #tpu.memory_space<vmem>>, %arg6: memref<1x8x4xf32, #tpu.memory_space<vmem>>, %arg7: memref<1x8x256xf32, #tpu.memory_space<vmem>>, %arg8: memref<16x256xbf16, #tpu.memory_space<vmem>>) attributes {dimension_semantics = [#tpu.dimension_semantics<parallel>, #tpu.dimension_semantics<parallel>, #tpu.dimension_semantics<arbitrary>], iteration_bounds = array<i64: 2, 2, 2>, scalar_prefetch = 0 : i64, scratch_operands = 1 : i64, tpu.core_type = #tpu.core_type<tc>, window_params = [{transform_indices = @transform_0, window_bounds = array<i64: 1, 16, 1>}, {transform_indices = @transform_1, window_bounds = array<i64: 1, 8, 16>}, {transform_indices = @transform_2, window_bounds = array<i64: 1, 8, 256>}, {transform_indices = @transform_3, window_bounds = array<i64: 1, 8, 4>}, {transform_indices = @transform_4, window_bounds = array<i64: 1, 8, 256>}]} {
    %c0_i32 = arith.constant 0 : i32
    %0 = arith.cmpi eq, %arg2, %c0_i32 : i32
    %1 = arith.extui %0 : i1 to i32
    %c0_i32_0 = arith.constant 0 : i32
    %2 = arith.cmpi ne, %1, %c0_i32_0 : i32
    scf.if %2 {
      %c0_14 = arith.constant 0 : index
      %c0_15 = arith.constant 0 : index
      %c0_16 = arith.constant 0 : index
      %29 = vector.load %arg3[%c0_14, %c0_15, %c0_16] : memref<1x16x1xi32, #tpu.memory_space<vmem>>, vector<1x16x1xi32>
      %30 = vector.shape_cast %29 : vector<1x16x1xi32> to vector<16x1xi32>
      %31 = tpu.iota {dimensions = array<i32: 1>} : vector<16x256xi32>
      %c256_i32 = arith.constant 256 : i32
      %32 = arith.muli %arg1, %c256_i32 : i32
      %33 = vector.broadcast %32 : i32 to vector<16x1xi32>
      %34 = arith.subi %30, %33 : vector<16x1xi32>
      %35 = vector.broadcast %34 : vector<16x1xi32> to vector<16x256xi32>
      %36 = arith.cmpi eq, %31, %35 : vector<16x256xi32>
      %37 = arith.extui %36 : vector<16x256xi1> to vector<16x256xi32>
      %38 = arith.sitofp %37 : vector<16x256xi32> to vector<16x256xf32>
      %39 = arith.truncf %38 : vector<16x256xf32> to vector<16x256xbf16>
      %c0_17 = arith.constant 0 : index
      %c0_18 = arith.constant 0 : index
      %40 = vector.load %arg8[%c0_17, %c0_18] : memref<16x256xbf16, #tpu.memory_space<vmem>>, vector<16x256xbf16>
      tpu.vector_store %arg8[%c0_17, %c0_18], %39 {strides = array<i32>} : memref<16x256xbf16, #tpu.memory_space<vmem>>, vector<16x256xbf16>,
    } else {
    }
    %c0 = arith.constant 0 : index
    %c0_1 = arith.constant 0 : index
    %c0_2 = arith.constant 0 : index
    %3 = vector.load %arg4[%c0, %c0_1, %c0_2] : memref<1x8x16xbf16, #tpu.memory_space<vmem>>, vector<1x8x16xbf16>
    %4 = vector.shape_cast %3 : vector<1x8x16xbf16> to vector<8x16xbf16>
    %c0_3 = arith.constant 0 : index
    %c0_4 = arith.constant 0 : index
    %5 = vector.load %arg8[%c0_3, %c0_4] : memref<16x256xbf16, #tpu.memory_space<vmem>>, vector<16x256xbf16>
    %cst = arith.constant dense<0.000000e+00> : vector<8x256xf32>
    %6 = tpu.matmul %4, %5, %cst {dimension_numbers = #tpu.dot_dimension_numbers<[1], [0], [0], [1], [0, 0, 1, 1], [], []>} : vector<8x16xbf16>, vector<16x256xbf16>, vector<8x256xf32> -> vector<8x256xf32>
    %c0_5 = arith.constant 0 : index
    %c0_6 = arith.constant 0 : index
    %c0_7 = arith.constant 0 : index
    %7 = vector.load %arg6[%c0_5, %c0_6, %c0_7] : memref<1x8x4xf32, #tpu.memory_space<vmem>>, vector<1x8x4xf32>
    %8 = vector.shape_cast %7 : vector<1x8x4xf32> to vector<8x4xf32>
    %9 = vector.extract_strided_slice %8 {offsets = [0, 0], sizes = [8, 1], strides = [1, 1]} : vector<8x4xf32> to vector<8x1xf32>
    %10 = vector.extract_strided_slice %8 {offsets = [0, 1], sizes = [8, 1], strides = [1, 1]} : vector<8x4xf32> to vector<8x1xf32>
    %11 = vector.extract_strided_slice %8 {offsets = [0, 2], sizes = [8, 1], strides = [1, 1]} : vector<8x4xf32> to vector<8x1xf32>
    %12 = vector.extract_strided_slice %8 {offsets = [0, 3], sizes = [8, 1], strides = [1, 1]} : vector<8x4xf32> to vector<8x1xf32>
    %c0_8 = arith.constant 0 : index
    %c0_9 = arith.constant 0 : index
    %c0_10 = arith.constant 0 : index
    %13 = vector.load %arg5[%c0_8, %c0_9, %c0_10] : memref<1x8x256xf32, #tpu.memory_space<vmem>>, vector<1x8x256xf32>
    %14 = vector.shape_cast %13 : vector<1x8x256xf32> to vector<8x256xf32>
    %15 = vector.broadcast %9 : vector<8x1xf32> to vector<8x256xf32>
    %16 = arith.subf %14, %15 : vector<8x256xf32>
    %17 = math.exp %16 : vector<8x256xf32>
    %18 = vector.broadcast %10 : vector<8x1xf32> to vector<8x256xf32>
    %19 = arith.mulf %17, %18 : vector<8x256xf32>
    %20 = vector.broadcast %11 : vector<8x1xf32> to vector<8x256xf32>
    %21 = arith.subf %6, %20 : vector<8x256xf32>
    %22 = math.exp %21 : vector<8x256xf32>
    %23 = vector.broadcast %12 : vector<8x1xf32> to vector<8x256xf32>
    %24 = arith.mulf %22, %23 : vector<8x256xf32>
    %25 = arith.addf %19, %24 : vector<8x256xf32>
    %c0_11 = arith.constant 0 : index
    %c0_12 = arith.constant 0 : index
    %c0_13 = arith.constant 0 : index
    %26 = vector.load %arg7[%c0_11, %c0_12, %c0_13] : memref<1x8x256xf32, #tpu.memory_space<vmem>>, vector<1x8x256xf32>
    %27 = vector.shape_cast %26 : vector<1x8x256xf32> to vector<8x256xf32>
    %28 = vector.shape_cast %25 : vector<8x256xf32> to vector<1x8x256xf32>
    tpu.vector_store %arg7[%c0_11, %c0_12, %c0_13], %28 {strides = array<i32>} : memref<1x8x256xf32, #tpu.memory_space<vmem>>, vector<1x8x256xf32>,
    return
  }
  func.func @transform_0(%arg0: i32, %arg1: i32, %arg2: i32) -> (i32, i32, i32) {
    %c0_i32 = arith.constant 0 : i32
    %c0_i32_0 = arith.constant 0 : i32
    %c0_i32_1 = arith.constant 0 : i32
    return %arg0, %c0_i32, %c0_i32_0 : i32, i32, i32
  }
  func.func @transform_1(%arg0: i32, %arg1: i32, %arg2: i32) -> (i32, i32, i32) {
    %c0_i32 = arith.constant 0 : i32
    %c0_i32_0 = arith.constant 0 : i32
    return %arg0, %arg2, %c0_i32 : i32, i32, i32
  }
  func.func @transform_2(%arg0: i32, %arg1: i32, %arg2: i32) -> (i32, i32, i32) {
    %c0_i32 = arith.constant 0 : i32
    return %arg0, %arg2, %arg1 : i32, i32, i32
  }
  func.func @transform_3(%arg0: i32, %arg1: i32, %arg2: i32) -> (i32, i32, i32) {
    %c0_i32 = arith.constant 0 : i32
    %c0_i32_0 = arith.constant 0 : i32
    return %arg0, %arg2, %c0_i32 : i32, i32, i32
  }
  func.func @transform_4(%arg0: i32, %arg1: i32, %arg2: i32) -> (i32, i32, i32) {
    %c0_i32 = arith.constant 0 : i32
    return %arg0, %arg2, %arg1 : i32, i32, i32
  }
}

</mosaic_0001>

<llo_original>
// kernel: tpu_custom_call.1
$region0: #{tpu_custom_call.1}
  #allocation0 [shape = 'u32[]', space=smem, size = 0x4, offset = 0x4, fixed_abs, tag = 'smem constant byte address 0x4 - core index']
  #allocation1 [shape = 'u32[144,128]{1,0:T(1,128)}', space=vmem, size = 0x12000, scoped, tag = 'internal scratch']
  #allocation2 [shape = 'bf16[16,256]{1,0:T(8,128)(2,1)}', space=vmem, size = 0x2000, scoped, tag = 'scratch operand']
  %s0 = inlined_call_operand.vmem [shape: s32[2,16,1], index: 0, kind: input, shape index: {}]
  %s1 = inlined_call_operand.vmem [shape: bf16[2,16,16], index: 1, kind: input, shape index: {}]
  %s2 = inlined_call_operand.hbm [shape: f32[2,16,512], index: 2, kind: input, shape index: {}]
  %s3 = inlined_call_operand.vmem [shape: f32[2,16,4], index: 3, kind: input, shape index: {}]
  %s4 = inlined_call_operand.hbm [shape: f32[2,16,512], index: 4, kind: output, shape index: {}]
  %s5 = sld [smem:[#allocation0]]
  $region57: #{tpu_custom_call.1} parent=0
    _
  %s7 = ssub.s32 1, %s5
  %s8 = scalar_select 0, %s7, %s5
  $region1: #{tpu_custom_call.1} parent=0
    #allocation3 [shape = 'u8[16384]{0}', space=vmem, size = 0x4000, scoped, tag = 'input window, operand 2']
    #allocation4 [shape = 's32[2]{0}', space=sflag, size = 0x8, scoped, tag = 'scoped memory for tpu_custom_call.1']
    #allocation5 [shape = 's32[2]{0}', space=sflag, size = 0x8, scoped, tag = 'scoped memory for tpu_custom_call.1']
    #allocation6 [shape = 'u8[16384]{0}', space=vmem, size = 0x4000, scoped, tag = 'output window, operand 0']
    %9 = vsyncpa [#allocation4], 0
    %s10 = scalar_lea.sflag [#allocation4], 1
    %11 = vsyncpa %s10, 0
    %12 = vsyncpa [#allocation5], 0
    %s13 = scalar_lea.sflag [#allocation5], 1
    %14 = vsyncpa %s13, 0
    loop: start=0, step=1, limit=10
    $region2: #{tpu_custom_call.1} parent=1 // loop_pre_header
      _
    $region3: #{tpu_custom_call.1} parent=1 // loop_header
      %s16 = sphi 0, %s20
      %p17 = scmp.ge.s32.totalorder %s16, 10
      %s23 = sphi 0, %s42
      %s24 = sphi 0, %s38
      %s25 = sphi 0, %s34
      %s26 = sphi 0, %s23
      %s27 = sphi 0, %s24
      %s28 = sphi 0, %s25
      %s29 = sphi 0, %s26
      %s30 = sphi 0, %s27
      %s31 = sphi 0, %s28
      %s45 = sphi 0, %s47
      %s48 = sphi 0, %s45
      %s49 = sphi 0, %s48
      %s65 = sphi 0, %s49
      %s73 = sphi 0, %s75
      %s76 = sphi 0, %s73
      %s77 = sphi 0, %s76
      %s93 = sphi 0, %s77
      %s103 = sphi 0, %s105
      %s106 = sphi 0, %s103
      %s107 = sphi 0, %s106
      %s123 = sphi 0, %s107
      %s131 = sphi 0, %s133
      %s134 = sphi 0, %s131
      %s135 = sphi 0, %s134
      %s151 = sphi 0, %s135
      %s161 = sphi 0, %s163
      %s164 = sphi 0, %s161
      %s165 = sphi 0, %s164
      %s181 = sphi 0, %s165
    $region4: #{tpu_custom_call.1} parent=1 // loop_header_branch
      %19 = sbr.rel (%p17) target = $region8
    $region5: #{tpu_custom_call.1} parent=1 // loop_body
      %s21 = ssub.s32 %s16, 1
      %s22 = ssub.s32 %s16, 2
      %s32 = sadd.s32 1, %s25
      %p33 = scmp.ge.s32.totalorder %s32, 2
      %s34 = scalar_select %p33, 0, %s32
      %s35 = sadd.s32 1, %s24
      %s36 = scalar_select %p33, %s35, %s24
      %p37 = scmp.ge.s32.totalorder %s36, 2
      %s38 = scalar_select %p37, 0, %s36
      %s39 = sadd.s32 1, %s23
      %s40 = scalar_select %p37, %s39, %s23
      %p41 = scmp.ge.s32.totalorder %s40, 2
      %s42 = scalar_select %p41, 0, %s40
      %s43 = ssub.s32 %s23, %s42
      %p44 = scmp.eq.s32.totalorder %s43, 0
      %s46 = sadd.s32 %s45, 1
      %s47 = scalar_select %p44, %s45, %s46
      %p50 = pneg %p44
      %p51 = scmp.eq.s32.totalorder %s16, 7
      %p52 = por %p50, %p51
      %p53 = scmp.ne.s32.totalorder %s45, %s48
      %p54 = scmp.eq.s32.totalorder %s16, 0
      %p55 = por %p53, %p54
      %p56 = scmp.ne.s32.totalorder %s45, %s48
      %p57 = scmp.eq.s32.totalorder %s21, 7
      %p58 = por %p56, %p57
      %p59 = scmp.ne.s32.totalorder %s48, %s49
      %p60 = scmp.eq.s32.totalorder %s21, 0
      %p61 = por %p59, %p60
      %p62 = scmp.ne.s32.totalorder %s48, %s49
      %p63 = scmp.eq.s32.totalorder %s22, 7
      %p64 = por %p62, %p63
      %p66 = scmp.ne.s32.totalorder %s49, %s65
      %p67 = scmp.eq.s32.totalorder %s22, 0
      %p68 = por %p66, %p67
      %s69 = ssub.s32 %s23, %s42
      %s70 = ssub.s32 %s25, %s34
      %s71 = sor.u32 %s69, %s70
      %p72 = scmp.eq.s32.totalorder %s71, 0
      %s74 = sadd.s32 %s73, 1
      %s75 = scalar_select %p72, %s73, %s74
      %p78 = pneg %p72
      %p79 = scmp.eq.s32.totalorder %s16, 7
      %p80 = por %p78, %p79
      %p81 = scmp.ne.s32.totalorder %s73, %s76
      %p82 = scmp.eq.s32.totalorder %s16, 0
      %p83 = por %p81, %p82
      %p84 = scmp.ne.s32.totalorder %s73, %s76
      %p85 = scmp.eq.s32.totalorder %s21, 7
      %p86 = por %p84, %p85
      %p87 = scmp.ne.s32.totalorder %s76, %s77
      %p88 = scmp.eq.s32.totalorder %s21, 0
      %p89 = por %p87, %p88
      %p90 = scmp.ne.s32.totalorder %s76, %s77
      %p91 = scmp.eq.s32.totalorder %s22, 7
      %p92 = por %p90, %p91
      %p94 = scmp.ne.s32.totalorder %s77, %s93
      %p95 = scmp.eq.s32.totalorder %s22, 0
      %p96 = por %p94, %p95
      %s97 = ssub.s32 %s23, %s42
      %s98 = ssub.s32 %s25, %s34
      %s99 = sor.u32 %s97, %s98
      %s100 = ssub.s32 %s24, %s38
      %s101 = sor.u32 %s99, %s100
      %p102 = scmp.eq.s32.totalorder %s101, 0
      %s104 = sadd.s32 %s103, 1
      %s105 = scalar_select %p102, %s103, %s104
      %p108 = pneg %p102
      %p109 = scmp.eq.s32.totalorder %s16, 7
      %p110 = por %p108, %p109
      %p111 = scmp.ne.s32.totalorder %s103, %s106
      %p112 = scmp.eq.s32.totalorder %s16, 0
      %p113 = por %p111, %p112
      %p114 = scmp.ne.s32.totalorder %s103, %s106
      %p115 = scmp.eq.s32.totalorder %s21, 7
      %p116 = por %p114, %p115
      %p117 = scmp.ne.s32.totalorder %s106, %s107
      %p118 = scmp.eq.s32.totalorder %s21, 0
      %p119 = por %p117, %p118
      %p120 = scmp.ne.s32.totalorder %s106, %s107
      %p121 = scmp.eq.s32.totalorder %s22, 7
      %p122 = por %p120, %p121
      %p124 = scmp.ne.s32.totalorder %s107, %s123
      %p125 = scmp.eq.s32.totalorder %s22, 0
      %p126 = por %p124, %p125
      %s127 = ssub.s32 %s23, %s42
      %s128 = ssub.s32 %s25, %s34
      %s129 = sor.u32 %s127, %s128
      %p130 = scmp.eq.s32.totalorder %s129, 0
      %s132 = sadd.s32 %s131, 1
      %s133 = scalar_select %p130, %s131, %s132
      %p136 = pneg %p130
      %p137 = scmp.eq.s32.totalorder %s16, 7
      %p138 = por %p136, %p137
      %p139 = scmp.ne.s32.totalorder %s131, %s134
      %p140 = scmp.eq.s32.totalorder %s16, 0
      %p141 = por %p139, %p140
      %p142 = scmp.ne.s32.totalorder %s131, %s134
      %p143 = scmp.eq.s32.totalorder %s21, 7
      %p144 = por %p142, %p143
      %p145 = scmp.ne.s32.totalorder %s134, %s135
      %p146 = scmp.eq.s32.totalorder %s21, 0
      %p147 = por %p145, %p146
      %p148 = scmp.ne.s32.totalorder %s134, %s135
      %p149 = scmp.eq.s32.totalorder %s22, 7
      %p150 = por %p148, %p149
      %p152 = scmp.ne.s32.totalorder %s135, %s151
      %p153 = scmp.eq.s32.totalorder %s22, 0
      %p154 = por %p152, %p153
      %s155 = ssub.s32 %s23, %s42
      %s156 = ssub.s32 %s25, %s34
      %s157 = sor.u32 %s155, %s156
      %s158 = ssub.s32 %s24, %s38
      %s159 = sor.u32 %s157, %s158
      %p160 = scmp.eq.s32.totalorder %s159, 0
      %s162 = sadd.s32 %s161, 1
      %s163 = scalar_select %p160, %s161, %s162
      %p166 = pneg %p160
      %p167 = scmp.eq.s32.totalorder %s16, 7
      %p168 = por %p166, %p167
      %p169 = scmp.ne.s32.totalorder %s161, %s164
      %p170 = scmp.eq.s32.totalorder %s16, 0
      %p171 = por %p169, %p170
      %p172 = scmp.ne.s32.totalorder %s161, %s164
      %p173 = scmp.eq.s32.totalorder %s21, 7
      %p174 = por %p172, %p173
      %p175 = scmp.ne.s32.totalorder %s164, %s165
      %p176 = scmp.eq.s32.totalorder %s21, 0
      %p177 = por %p175, %p176
      %p178 = scmp.ne.s32.totalorder %s164, %s165
      %p179 = scmp.eq.s32.totalorder %s22, 7
      %p180 = por %p178, %p179
      %p182 = scmp.ne.s32.totalorder %s165, %s181
      %p183 = scmp.eq.s32.totalorder %s22, 0
      %p184 = por %p182, %p183
      %p185 = scmp.le.s32.totalorder 1, %s16
      %p186 = scmp.lt.s32.totalorder %s16, 9
      %p187 = pnand %p185, %p186
      %p188 = pneg %p187
      // Predicated region
      $region9: #{tpu_custom_call.1} parent=5 // pred_check
        _
      $region10: #{tpu_custom_call.1} parent=5 // pred_check_branch
        %190 = sbr.rel (%p187) target = $region12
      $region11: #{tpu_custom_call.1} parent=5 // pred_region
        %s191 = ssub.s32 %s16, 1
      $region12: #{tpu_custom_call.1} parent=5 // pred_fallthru
        _
      %p192 = scmp.lt.s32.totalorder %s16, 8
      // Predicated region
      $region13: #{tpu_custom_call.1} parent=5 // pred_check
        %p193 = pneg %p192
      $region14: #{tpu_custom_call.1} parent=5 // pred_check_branch
        %195 = sbr.rel (%p193) target = $region16
      $region15: #{tpu_custom_call.1} parent=5 // pred_region
        // Predicated region
        $region17: #{tpu_custom_call.1} parent=15 // pred_check
          %p196 = pneg %p55
        $region18: #{tpu_custom_call.1} parent=15 // pred_check_branch
          %198 = sbr.rel (%p196) target = $region20
        $region19: #{tpu_custom_call.1} parent=15 // pred_region
          %p199 = scmp.lt.s32.totalorder %s23, 1
          %s200 = scalar_select %p199, %s23, 1
          %s201 = smul.addr %s200, 2
          %s202 = smul.addr %s201, 8
          %s203 = scalar_lea.vmem %s0, %s202
        $region20: #{tpu_custom_call.1} parent=15 // pred_fallthru
          _
        // Predicated region
        $region21: #{tpu_custom_call.1} parent=15 // pred_check
          %p204 = pneg %p83
        $region22: #{tpu_custom_call.1} parent=15 // pred_check_branch
          %206 = sbr.rel (%p204) target = $region24
        $region23: #{tpu_custom_call.1} parent=15 // pred_region
          %p207 = scmp.lt.s32.totalorder %s23, 1
          %s208 = scalar_select %p207, %s23, 1
          %p209 = scmp.lt.s32.totalorder %s25, 1
          %s210 = scalar_select %p209, %s25, 1
          %s211 = smul.addr %s208, 2
          %s212 = sadd.s32 %s210, %s211
          %s213 = smul.addr %s212, 4
          %s214 = scalar_lea.vmem %s1, %s213
        $region24: #{tpu_custom_call.1} parent=15 // pred_fallthru
          _
        // Predicated region
        $region25: #{tpu_custom_call.1} parent=15 // pred_check
          %p215 = pneg %p113
        $region26: #{tpu_custom_call.1} parent=15 // pred_check_branch
          %217 = sbr.rel (%p215) target = $region28
        $region27: #{tpu_custom_call.1} parent=15 // pred_region
          %s218 = sand.u32 %s103, 1
          %s219 = scalar_lea.sflag [#allocation4], %s218
          %s220 = sand.u32 %s103, 1
          %s221 = smul.addr %s220, 16
          %s222 = scalar_lea.vmem [#allocation3], %s221
          %s223 = smul.u32 2, %s24
          %s225 = ssub.s32 256, 256
          %226 = vsyncadd %s219, %s225
          %s227 = smul.addr %s25, 4
          %s228 = sadd.s32 %s223, %s227
          %s229 = smul.addr %s23, 8
          %s230 = sadd.s32 %s228, %s229
          %s231 = smul.addr %s230, 128
          %s232 = scalar_lea.hbm %s2, %s231
          %s234 = sshll.u32 %s222, 4
          %s235 = int_to_ptr.vmem [resolvable:$true] %s234
          %237 = dma.hbm_to_vmem [thread:$0]  %s232, 256, %s235, %s219
        $region28: #{tpu_custom_call.1} parent=15 // pred_fallthru
          _
        // Predicated region
        $region29: #{tpu_custom_call.1} parent=15 // pred_check
          %p238 = pneg %p141
        $region30: #{tpu_custom_call.1} parent=15 // pred_check_branch
          %240 = sbr.rel (%p238) target = $region32
        $region31: #{tpu_custom_call.1} parent=15 // pred_region
          %p241 = scmp.lt.s32.totalorder %s23, 1
          %s242 = scalar_select %p241, %s23, 1
          %p243 = scmp.lt.s32.totalorder %s25, 1
          %s244 = scalar_select %p243, %s25, 1
          %s245 = smul.addr %s242, 2
          %s246 = sadd.s32 %s244, %s245
          %s247 = smul.addr %s246, 8
          %s248 = scalar_lea.vmem %s3, %s247
        $region32: #{tpu_custom_call.1} parent=15 // pred_fallthru
          _
      $region16: #{tpu_custom_call.1} parent=5 // pred_fallthru
        _
      %p249 = scmp.le.s32.totalorder 1, %s16
      %p250 = scmp.lt.s32.totalorder %s16, 9
      %p251 = pnand %p249, %p250
      %p252 = pneg %p251
      // Predicated region
      $region33: #{tpu_custom_call.1} parent=5 // pred_check
        _
      $region34: #{tpu_custom_call.1} parent=5 // pred_check_branch
        %254 = sbr.rel (%p251) target = $region36
      $region35: #{tpu_custom_call.1} parent=5 // pred_region
        %s255 = ssub.s32 %s16, 1
        %s256 = sand.u32 %s106, 1
        %s257 = scalar_lea.sflag [#allocation4], %s256
        %s258 = sand.u32 %s106, 1
        %s259 = smul.addr %s258, 16
        %s260 = scalar_lea.vmem [#allocation3], %s259
        // Predicated region
        $region37: #{tpu_custom_call.1} parent=35 // pred_check
          %p261 = pneg %p119
        $region38: #{tpu_custom_call.1} parent=35 // pred_check_branch
          %263 = sbr.rel (%p261) target = $region40
        $region39: #{tpu_custom_call.1} parent=35 // pred_region
          %264 = dma.done %s257, 256
        $region40: #{tpu_custom_call.1} parent=35 // pred_fallthru
          _
        %p265 = scmp.lt.s32.totalorder %s26, 1
        %s266 = scalar_select %p265, %s26, 1
        %s267 = smul.addr %s266, 2
        %s268 = smul.addr %s267, 8
        %s269 = scalar_lea.vmem %s0, %s268
        %p270 = pneg %p61
        %p271 = pneg %p58
        %p272 = scmp.lt.s32.totalorder %s26, 1
        %s273 = scalar_select %p272, %s26, 1
        %p274 = scmp.lt.s32.totalorder %s28, 1
        %s275 = scalar_select %p274, %s28, 1
        %s276 = smul.addr %s273, 2
        %s277 = sadd.s32 %s275, %s276
        %s278 = smul.addr %s277, 4
        %s279 = scalar_lea.vmem %s1, %s278
        %p280 = pneg %p89
        %p281 = pneg %p86
        %s282 = sand.u32 %s106, 1
        %s283 = scalar_lea.sflag [#allocation4], %s282
        %s284 = sand.u32 %s106, 1
        %s285 = smul.addr %s284, 16
        %s286 = scalar_lea.vmem [#allocation3], %s285
        %p287 = pneg %p119
        %p288 = pneg %p116
        %p289 = scmp.lt.s32.totalorder %s26, 1
        %s290 = scalar_select %p289, %s26, 1
        %p291 = scmp.lt.s32.totalorder %s28, 1
        %s292 = scalar_select %p291, %s28, 1
        %s293 = smul.addr %s290, 2
        %s294 = sadd.s32 %s292, %s293
        %s295 = smul.addr %s294, 8
        %s296 = scalar_lea.vmem %s3, %s295
        %p297 = pneg %p147
        %p298 = pneg %p144
        %p299 = pneg %p177
        %p300 = pneg %p174
        %s301 = sand.u32 %s164, 1
        %s302 = scalar_lea.sflag [#allocation5], %s301
        %s303 = sand.u32 %s164, 1
        %s304 = smul.addr %s303, 16
        %s305 = scalar_lea.vmem [#allocation6], %s304
        %p306 = scmp.lt.s32.totalorder %s26, 1
        %s307 = scalar_select %p306, %s26, 1
        %s308 = smul.addr %s307, 2
        %s309 = smul.addr %s308, 8
        %s310 = scalar_lea.vmem %s0, %s309
        %p311 = scmp.lt.s32.totalorder %s26, 1
        %s312 = scalar_select %p311, %s26, 1
        %p313 = scmp.lt.s32.totalorder %s28, 1
        %s314 = scalar_select %p313, %s28, 1
        %s315 = smul.addr %s312, 2
        %s316 = sadd.s32 %s314, %s315
        %s317 = smul.addr %s316, 4
        %s318 = scalar_lea.vmem %s1, %s317
        %s319 = smul.u32 2, %s27
        %p320 = scmp.lt.s32.totalorder %s26, 1
        %s321 = scalar_select %p320, %s26, 1
        %p322 = scmp.lt.s32.totalorder %s28, 1
        %s323 = scalar_select %p322, %s28, 1
        %s324 = smul.addr %s321, 2
        %s325 = sadd.s32 %s323, %s324
        %s326 = smul.addr %s325, 8
        %s327 = scalar_lea.vmem %s3, %s326
        %s328 = smul.u32 2, %s27
        %p330 = scmp.eq.s32.totalorder %s28, 0
        // Predicated region
        $region41: #{tpu_custom_call.1} parent=35 // pred_check
          %p331 = pneg %p330
        $region42: #{tpu_custom_call.1} parent=35 // pred_check_branch
          %333 = sbr.rel (%p331) target = $region44
        $region43: #{tpu_custom_call.1} parent=35 // pred_region
          %v334 = vld [vmem:[%s310] sm:$0xff]
          %v335 = vld [vmem:[%s310 + $0x8] sm:$0xff]
          %v336 = vlaneseq
          %v337 = vand.u32 %v336, 127
          %v338 = vadd.s32 %v337, 128
          %s339 = smul.u32 %s27, 256
          %v340 = vstv %s339
          %v341 = vsub.s32 %v334, %v340
          %v342 = vsub.s32 %v335, %v340
          %343 = vset.pattern.permute.xlu0 0
          %344 = vperm.xlu0 %343, %v341
          %v345 = vpop.permute.xlu0 %344
          %346 = vset.pattern.permute.xlu0 0
          %347 = vperm.xlu0 %346, %v342
          %v348 = vpop.permute.xlu0 %347
          %vm349 = vcmp.eq.s32.totalorder %v337, %v345
          %vm350 = vcmp.eq.s32.totalorder %v338, %v345
          %vm351 = vcmp.eq.s32.totalorder %v337, %v348
          %vm352 = vcmp.eq.s32.totalorder %v338, %v348
          %v353 = vsel %vm349, 1, 0
          %v354 = vsel %vm350, 1, 0
          %v355 = vsel %vm351, 1, 0
          %v356 = vsel %vm352, 1, 0
          %v357 = vcvt.s32.f32 %v353
          %v358 = vcvt.s32.f32 %v354
          %v359 = vcvt.s32.f32 %v355
          %v360 = vcvt.s32.f32 %v356
          %v361 = vpack.c.bf16 %v359, %v357
          %v362 = vpack.c.bf16 %v360, %v358
          %v365 = vunpack.c.l.b16 %v361
          %v366 = vunpack.c.l.b16 %v362
          %v367 = vunpack.c.h.b16 %v361
          %v368 = vunpack.c.h.b16 %v362
          %v369 = vpack.c.b16 %v366, %v365
          %v370 = vpack.c.b16 %v368, %v367
          %373 = vst [vmem:[#allocation2] sm:$0xff] %v369
          %374 = vst [vmem:[#allocation2 + $0x8] sm:$0xff] %v370
        $region44: #{tpu_custom_call.1} parent=35 // pred_fallthru
          _
        %v375 = vld [vmem:[%s318] sm:$0xf]
        %v376 = vld [vmem:[#allocation2] sm:$0xff]
        %v377 = vld [vmem:[#allocation2 + $0x8] sm:$0xff]
        %v380 = vunpack.c.l.b16 %v376
        %v381 = vunpack.c.h.b16 %v376
        %v382 = vunpack.c.l.b16 %v377
        %v383 = vunpack.c.h.b16 %v377
        %v384 = vpack.c.b16 %v382, %v380
        %v385 = vpack.c.b16 %v383, %v381
        %vm388 = vcmask 130048
        %v390 = vsel %vm388, %v375, 0
        %392 = vmatprep.subr.bf16.mxu0 0
        %393 = vmatpush1.bf16.msra.mxu0 0
        %394 = vmatprep.subr.bf16.mxu0 0
        %395 = vmatpush1.bf16.msra.mxu0 0
        %396 = vmatprep.subr.bf16.mxu0 0
        %397 = vmatpush1.bf16.msra.mxu0 0
        %398 = vmatprep.subr.bf16.mxu0 0
        %399 = vmatpush1.bf16.msra.mxu0 0
        %400 = vmatprep.subr.bf16.mxu0 0
        %401 = vmatpush1.bf16.msra.mxu0 0
        %402 = vmatprep.subr.bf16.mxu0 0
        %403 = vmatpush1.bf16.msra.mxu0 0
        %404 = vmatprep.subr.bf16.mxu0 0
        %405 = vmatpush1.bf16.msra.mxu0 0
        %406 = vmatprep.subr.bf16.mxu0 %v385
        %407 = vmatpush1.bf16.msra.mxu0 %v384
        %408 = vmatprep.subr.bf16.mxu0 0
        %409 = vmatpush2.bf16.msra.mxu0 0
        %410 = vmatprep.subr.bf16.mxu0 0
        %411 = vmatpush2.bf16.msra.mxu0 0
        %412 = vmatprep.subr.bf16.mxu0 0
        %413 = vmatpush2.bf16.msra.mxu0 0
        %414 = vmatprep.subr.bf16.mxu0 0
        %415 = vmatpush2.bf16.msra.mxu0 0
        %416 = vmatprep.subr.bf16.mxu0 0
        %417 = vmatpush2.bf16.msra.mxu0 0
        %418 = vmatprep.subr.bf16.mxu0 0
        %419 = vmatpush2.bf16.msra.mxu0 0
        %420 = vmatprep.subr.bf16.mxu0 0
        %421 = vmatpush2.bf16.msra.mxu0 0
        %422 = vmatprep.subr.bf16.mxu0 0
        %423 = vmatpush2.bf16.msra.mxu0 0
        %424 = vmatprep.mubr.bf16.mxu0 0
        %425 = vmatmul.mubr.bf16.gmra.mxu0 %v390
        %v426 = vpop.f32.mrf.mxu0
        %v427 = vadd.f32 0.0, %v426
        %v428 = vpop.f32.mrf.mxu0
        %v429 = vadd.f32 0.0, %v428
        %v430 = vpop.f32.mrf.mxu0
        %v431 = vpop.f32.mrf.mxu0
        %432 = vdwg.mxu0
        %v433 = vld [vmem:[%s327] sm:$0xff]
        %v434 = vld [vmem:[%s260] sm:$0xff]
        %v435 = vld [vmem:[%s260 + $0x8] sm:$0xff]
        %437 = vset.pattern.permute.xlu0 0
        %438 = vperm.xlu0 %437, %v433
        %v439 = vpop.permute.xlu0 %438
        %v441 = vsub.f32 %v434, %v439
        %v442 = vsub.f32 %v435, %v439
        %v443 = vmul.f32 %v441, 1.442695
        %v444 = vpow.pop %v443
        %v445 = vmul.f32 %v442, 1.442695
        %v446 = vpow.pop %v445
        %447 = vset.pattern.permute.xlu0 1
        %448 = vperm.xlu0 %447, %v433
        %v449 = vpop.permute.xlu0 %448
        %v451 = vmul.f32 %v444, %v449
        %v452 = vmul.f32 %v446, %v449
        %453 = vset.pattern.permute.xlu0 2
        %454 = vperm.xlu0 %453, %v433
        %v455 = vpop.permute.xlu0 %454
        %v457 = vsub.f32 %v427, %v455
        %v458 = vsub.f32 %v429, %v455
        %v459 = vmul.f32 %v457, 1.442695
        %v460 = vpow.pop %v459
        %v461 = vmul.f32 %v458, 1.442695
        %v462 = vpow.pop %v461
        %463 = vset.pattern.permute.xlu0 3
        %464 = vperm.xlu0 %463, %v433
        %v465 = vpop.permute.xlu0 %464
        %v467 = vmul.f32 %v460, %v465
        %v468 = vmul.f32 %v462, %v465
        %v469 = vadd.f32 %v451, %v467
        %v470 = vadd.f32 %v452, %v468
        %471 = vst [vmem:[%s305] sm:$0xff] %v469
        %472 = vst [vmem:[%s305 + $0x8] sm:$0xff] %v470
        %s473 = sand.u32 %s164, 1
        %s474 = scalar_lea.sflag [#allocation5], %s473
        %s475 = sand.u32 %s164, 1
        %s476 = smul.addr %s475, 16
        %s477 = scalar_lea.vmem [#allocation6], %s476
        // Predicated region
        $region45: #{tpu_custom_call.1} parent=35 // pred_check
          %p478 = pneg %p174
        $region46: #{tpu_custom_call.1} parent=35 // pred_check_branch
          %480 = sbr.rel (%p478) target = $region48
        $region47: #{tpu_custom_call.1} parent=35 // pred_region
          %s481 = smul.u32 2, %s27
          %s483 = ssub.s32 256, 256
          %484 = vsyncadd %s474, %s483
          %s485 = smul.addr %s28, 4
          %s486 = sadd.s32 %s481, %s485
          %s487 = smul.addr %s26, 8
          %s488 = sadd.s32 %s486, %s487
          %s489 = smul.addr %s488, 128
          %s490 = scalar_lea.hbm %s4, %s489
          %s492 = sshll.u32 %s477, 4
          %s493 = int_to_ptr.vmem [resolvable:$true] %s492
          %495 = dma.vmem_to_hbm [thread:$0]  %s493, 256, %s490, %s474
        $region48: #{tpu_custom_call.1} parent=35 // pred_fallthru
          _
      $region36: #{tpu_custom_call.1} parent=5 // pred_fallthru
        _
      %p496 = scmp.le.s32.totalorder 2, %s16
      // Predicated region
      $region49: #{tpu_custom_call.1} parent=5 // pred_check
        %p497 = pneg %p496
      $region50: #{tpu_custom_call.1} parent=5 // pred_check_branch
        %499 = sbr.rel (%p497) target = $region52
      $region51: #{tpu_custom_call.1} parent=5 // pred_region
        %s500 = ssub.s32 %s16, 2
        // Predicated region
        $region53: #{tpu_custom_call.1} parent=51 // pred_check
          %p501 = pneg %p180
        $region54: #{tpu_custom_call.1} parent=51 // pred_check_branch
          %503 = sbr.rel (%p501) target = $region56
        $region55: #{tpu_custom_call.1} parent=51 // pred_region
          %s504 = sand.u32 %s165, 1
          %s505 = scalar_lea.sflag [#allocation5], %s504
          %s506 = sand.u32 %s165, 1
          %s507 = smul.addr %s506, 16
          %s508 = scalar_lea.vmem [#allocation6], %s507
          %509 = dma.done %s505, 256
        $region56: #{tpu_custom_call.1} parent=51 // pred_fallthru
          _
      $region52: #{tpu_custom_call.1} parent=5 // pred_fallthru
        _
    $region6: #{tpu_custom_call.1} parent=1 // loop_footer
      %s20 = sadd.s32 1, %s16
    $region7: #{tpu_custom_call.1} parent=1 // loop_footer_branch
      %15 = sbr.rel target = $region3
    $region8: #{tpu_custom_call.1} parent=1 // loop_exit
      _
    %510 = vsyncpa [#allocation4], 1
    %s511 = scalar_lea.sflag [#allocation4], 1
    %512 = vsyncpa %s511, 1
    %513 = vsyncpa [#allocation5], 1
    %s514 = scalar_lea.sflag [#allocation5], 1
    %515 = vsyncpa %s514, 1

</llo_original>
